<compile_context>
chip_gen: v7x
topology: tpu7x:2x2x1
jax: 0.10.0
libtpu: 0.0.40
codegen_flags: <defaults>
</compile_context>

<pallas_src>
import functools

import jax
import jax.numpy as jnp
from jax.experimental import pallas as pl
from jax.experimental.pallas import tpu as pltpu

LANE = 128
NEG_BIG = -1e30  # bias for padded logit lanes -> exp underflows to exactly 0


def _round_up(n, m):
    return ((n + m - 1) // m) * m


def rnn_seq_kernel(x_ref, h0_ref, wcat_ref, bh_ref, who_ref, bho_ref,
                   out_ref, hfin_ref, xh_ref, *, ip):
    """One grid step = one RNN timestep of one sequence.

    xh_ref (VMEM scratch, shape (B, Ip+Hp)) holds [x_t | h_{t-1}] and carries
    the hidden state across timesteps of the "arbitrary" grid axis.
    """
    t = pl.program_id(1)

    # (Re)initialize the hidden half at the first timestep of every sequence.
    @pl.when(t == 0)
    def _():
        xh_ref[:, ip:] = h0_ref[...]

    # Load this timestep's input into the x half.
    xh_ref[:, :ip] = x_ref[0, 0]

    # Fused i2h + h2h: [x | h] @ [Wih ; Whh] + (bih + bhh)   (single MXU pass)
    pre = jnp.dot(xh_ref[...], wcat_ref[...],
                  preferred_element_type=jnp.float32) + bh_ref[...]
    h_new = jnp.tanh(pre)                      # EUP
    xh_ref[:, ip:] = h_new                     # carry hidden to the next step

    # h2o + numerically stable log-softmax (padded lanes carry a -1e30 bias).
    logits = jnp.dot(h_new, who_ref[...],
                     preferred_element_type=jnp.float32) + bho_ref[...]
    m = jnp.max(logits, axis=-1, keepdims=True)
    shifted = logits - m
    lse = jnp.log(jnp.sum(jnp.exp(shifted), axis=-1, keepdims=True))  # EUP

    out_ref[0, 0] = (shifted - lse).astype(out_ref.dtype)

    # Final hidden state for this sequence: only store on the last timestep.
    @pl.when(t == pl.num_programs(1) - 1)
    def _():
        hfin_ref[0] = h_new.astype(hfin_ref.dtype)


def rnn_forward_seq(x, hidden0, params):
    """Run the RNN cell over full sequences inside a single Pallas kernel.

    x:       (S, T, B, I)  — S independent sequences of length T
    hidden0: (B, H)        — initial hidden state (shared; initHidden() is zeros)
    returns  (log_probs (S, T, B, O), final_hidden (S, B, H))
    """
    wih, bih, whh, bhh, who, bho = params
    S, T, B, I = x.shape
    H = whh.shape[1]
    O = who.shape[1]

    Ip = _round_up(I, LANE)
    Hp = _round_up(H, LANE)
    Op = _round_up(O, LANE)
    K = Ip + Hp
    f32 = jnp.float32

    # ---- one-time layout plumbing (outside the kernel) ---------------------
    x_p = jnp.zeros((S, T, B, Ip), f32).at[..., :I].set(x)
    h0_p = jnp.zeros((B, Hp), f32).at[:, :H].set(hidden0)

    # Stacked recurrent weight [Wih ; Whh] and fused, pre-broadcast bias.
    w_cat = jnp.zeros((K, Hp), f32)
    w_cat = w_cat.at[:I, :H].set(wih)
    w_cat = w_cat.at[Ip:Ip + H, :H].set(whh)
    b_h = jnp.zeros((B, Hp), f32).at[:, :H].set(
        jnp.broadcast_to(bih + bhh, (B, H)))

    who_p = jnp.zeros((Hp, Op), f32).at[:H, :O].set(who)
    bho_b = jnp.full((B, Op), NEG_BIG, f32).at[:, :O].set(
        jnp.broadcast_to(bho, (B, O)))

    grid = (S, T)
    in_specs = [
        pl.BlockSpec((1, 1, B, Ip), lambda s, t: (s, t, 0, 0)),  # x_t streamed
        pl.BlockSpec((B, Hp), lambda s, t: (0, 0)),              # h0   resident
        pl.BlockSpec((K, Hp), lambda s, t: (0, 0)),              # [Wih;Whh] resident
        pl.BlockSpec((B, Hp), lambda s, t: (0, 0)),              # fused bias resident
        pl.BlockSpec((Hp, Op), lambda s, t: (0, 0)),             # Who  resident
        pl.BlockSpec((B, Op), lambda s, t: (0, 0)),              # bho  resident
    ]
    out_specs = (
        pl.BlockSpec((1, 1, B, Op), lambda s, t: (s, t, 0, 0)),  # per-step log-probs
        pl.BlockSpec((1, B, Hp), lambda s, t: (s, 0, 0)),        # final hidden / seq
    )
    out_shapes = (
        jax.ShapeDtypeStruct((S, T, B, Op), f32),
        jax.ShapeDtypeStruct((S, B, Hp), f32),
    )

    flops = S * T * (2 * B * K * Hp + 2 * B * Hp * Op)
    transcendentals = S * T * B * (Hp + Op + 1)          # tanh, exp, log
    bytes_accessed = 4 * (S * T * B * Ip + B * Hp + K * Hp + B * Hp +
                          Hp * Op + B * Op + S * T * B * Op + S * B * Hp)

    kernel = functools.partial(rnn_seq_kernel, ip=Ip)

    out_p, h_fin_p = pl.pallas_call(
        kernel,
        out_shape=out_shapes,
        grid_spec=pltpu.PrefetchScalarGridSpec(
            num_scalar_prefetch=0,
            grid=grid,
            in_specs=in_specs,
            out_specs=out_specs,
            scratch_shapes=[pltpu.VMEM((B, K), f32)],
        ),
        compiler_params=pltpu.CompilerParams(
            dimension_semantics=("parallel", "arbitrary")),
        cost_estimate=pl.CostEstimate(flops=int(flops),
                                      transcendentals=int(transcendentals),
                                      bytes_accessed=int(bytes_accessed)),
    )(x_p, h0_p, w_cat, b_h, who_p, bho_b)

    return out_p[..., :O], h_fin_p[..., :H]


def rnn_forward(x_t, hidden, params):
    """Single-step forward matching RNN.forward(input, hidden) exactly."""
    out, h_fin = rnn_forward_seq(x_t[None, None], hidden, params)
    return out[0, 0], h_fin[0]


# ---------------------------- reference & init ------------------------------
def init_params(key, input_size, hidden_size, output_size):
    """nn.Linear-style init, weights kept as (in_features, out_features)."""
    ks = jax.random.split(key, 6)

    def linear(kw, kb, fan_in, fan_out):
        bound = 1.0 / jnp.sqrt(jnp.float32(fan_in))
        w = jax.random.uniform(kw, (fan_in, fan_out), jnp.float32, -bound, bound)
        b = jax.random.uniform(kb, (1, fan_out), jnp.float32, -bound, bound)
        return w, b

    wih, bih = linear(ks[0], ks[1], input_size, hidden_size)
    whh, bhh = linear(ks[2], ks[3], hidden_size, hidden_size)
    who, bho = linear(ks[4], ks[5], hidden_size, output_size)
    return (wih, bih, whh, bhh, who, bho)


def rnn_cell_ref(x_t, h, params):
    wih, bih, whh, bhh, who, bho = params
    h_new = jnp.tanh(x_t @ wih + bih + h @ whh + bhh)
    log_probs = jax.nn.log_softmax(h_new @ who + bho, axis=1)
    return log_probs, h_new


def rnn_seq_ref(x, hidden0, params):
    def per_seq(x_seq):
        def step(h, x_t):
            out, h_new = rnn_cell_ref(x_t, h, params)
            return h_new, out
        h_fin, outs = jax.lax.scan(step, hidden0, x_seq)
        return outs, h_fin
    outs, h_fin = jax.vmap(per_seq)(x)
    return outs, h_fin


if __name__ == "__main__":
    key = jax.random.PRNGKey(0)
    k_x, k_h, k_p = jax.random.split(key, 3)

    # Small shapes consistent with the char-classification RNN tutorial.
    S, T, B = 2, 8, 8                 # independent sequences, seq len, batch
    input_size, hidden_size, output_size = 16, 32, 8

    x = jax.random.normal(k_x, (S, T, B, input_size), jnp.float32)
    hidden0 = jnp.zeros((B, hidden_size), jnp.float32)   # initHidden()
    params = init_params(k_p, input_size, hidden_size, output_size)

    # Full-sequence fused kernel.
    log_probs, h_final = rnn_forward_seq(x, hidden0, params)
    log_probs = jax.block_until_ready(log_probs)
    h_final = jax.block_until_ready(h_final)

    log_probs_ref, h_final_ref = rnn_seq_ref(x, hidden0, params)
    assert jnp.allclose(log_probs, log_probs_ref, atol=1e-4, rtol=1e-4), \
        float(jnp.max(jnp.abs(log_probs - log_probs_ref)))
    assert jnp.allclose(h_final, h_final_ref, atol=1e-4, rtol=1e-4), \
        float(jnp.max(jnp.abs(h_final - h_final_ref)))

    # Single-step API matching the original module's forward signature.
    h_rand = jax.random.normal(k_h, (B, hidden_size), jnp.float32)
    out1, h1 = rnn_forward(x[0, 0], h_rand, params)
    out1 = jax.block_until_ready(out1)
    out1_ref, h1_ref = rnn_cell_ref(x[0, 0], h_rand, params)
    assert jnp.allclose(out1, out1_ref, atol=1e-4, rtol=1e-4)
    assert jnp.allclose(h1, h1_ref, atol=1e-4, rtol=1e-4)

    print("KERNEL_OK")
</pallas_src>

<mosaic_0001>
module attributes {stable_mosaic.version = 11 : i64} {
  func.func @rnn_seq_kernel(%arg0: i32, %arg1: i32, %arg2: memref<1x1x8x128xf32, #tpu.memory_space<vmem>>, %arg3: memref<8x128xf32, #tpu.memory_space<vmem>>, %arg4: memref<256x128xf32, #tpu.memory_space<vmem>>, %arg5: memref<8x128xf32, #tpu.memory_space<vmem>>, %arg6: memref<128x128xf32, #tpu.memory_space<vmem>>, %arg7: memref<8x128xf32, #tpu.memory_space<vmem>>, %arg8: memref<1x1x8x128xf32, #tpu.memory_space<vmem>>, %arg9: memref<1x8x128xf32, #tpu.memory_space<vmem>>, %arg10: memref<8x256xf32, #tpu.memory_space<vmem>>) attributes {dimension_semantics = [#tpu.dimension_semantics<parallel>, #tpu.dimension_semantics<arbitrary>], iteration_bounds = array<i64: 2, 8>, scalar_prefetch = 0 : i64, scratch_operands = 1 : i64, tpu.core_type = #tpu.core_type<tc>, window_params = [{transform_indices = @transform_0, window_bounds = array<i64: 1, 1, 8, 128>}, {pipeline_mode = #tpu.pipeline_mode<synchronous>, transform_indices = @transform_1, window_bounds = array<i64: 8, 128>}, {pipeline_mode = #tpu.pipeline_mode<synchronous>, transform_indices = @transform_2, window_bounds = array<i64: 256, 128>}, {pipeline_mode = #tpu.pipeline_mode<synchronous>, transform_indices = @transform_3, window_bounds = array<i64: 8, 128>}, {pipeline_mode = #tpu.pipeline_mode<synchronous>, transform_indices = @transform_4, window_bounds = array<i64: 128, 128>}, {pipeline_mode = #tpu.pipeline_mode<synchronous>, transform_indices = @transform_5, window_bounds = array<i64: 8, 128>}, {transform_indices = @transform_6, window_bounds = array<i64: 1, 1, 8, 128>}, {transform_indices = @transform_7, window_bounds = array<i64: 1, 8, 128>}]} {
    %c0_i32 = arith.constant 0 : i32
    %0 = arith.cmpi eq, %arg1, %c0_i32 : i32
    %1 = arith.extui %0 : i1 to i32
    %c0_i32_0 = arith.constant 0 : i32
    %2 = arith.cmpi ne, %1, %c0_i32_0 : i32
    scf.if %2 {
      %c0_25 = arith.constant 0 : index
      %c0_26 = arith.constant 0 : index
      %33 = vector.load %arg3[%c0_25, %c0_26] : memref<8x128xf32, #tpu.memory_space<vmem>>, vector<8x128xf32>
      %c0_27 = arith.constant 0 : index
      %c128_28 = arith.constant 128 : index
      %34 = vector.load %arg10[%c0_27, %c128_28] : memref<8x256xf32, #tpu.memory_space<vmem>>, vector<8x128xf32>
      tpu.vector_store %arg10[%c0_27, %c128_28], %33 {strides = array<i32>} : memref<8x256xf32, #tpu.memory_space<vmem>>, vector<8x128xf32>,
    } else {
    }
    %c0 = arith.constant 0 : index
    %c0_1 = arith.constant 0 : index
    %c0_2 = arith.constant 0 : index
    %c0_3 = arith.constant 0 : index
    %3 = vector.load %arg2[%c0, %c0_1, %c0_2, %c0_3] : memref<1x1x8x128xf32, #tpu.memory_space<vmem>>, vector<1x1x8x128xf32>
    %4 = vector.shape_cast %3 : vector<1x1x8x128xf32> to vector<8x128xf32>
    %c0_4 = arith.constant 0 : index
    %c0_5 = arith.constant 0 : index
    %5 = vector.load %arg10[%c0_4, %c0_5] : memref<8x256xf32, #tpu.memory_space<vmem>>, vector<8x128xf32>
    tpu.vector_store %arg10[%c0_4, %c0_5], %4 {strides = array<i32>} : memref<8x256xf32, #tpu.memory_space<vmem>>, vector<8x128xf32>,
    %c0_6 = arith.constant 0 : index
    %c0_7 = arith.constant 0 : index
    %6 = vector.load %arg10[%c0_6, %c0_7] : memref<8x256xf32, #tpu.memory_space<vmem>>, vector<8x256xf32>
    %c0_8 = arith.constant 0 : index
    %c0_9 = arith.constant 0 : index
    %7 = vector.load %arg4[%c0_8, %c0_9] : memref<256x128xf32, #tpu.memory_space<vmem>>, vector<256x128xf32>
    %cst = arith.constant dense<0.000000e+00> : vector<8x128xf32>
    %8 = tpu.matmul %6, %7, %cst {dimension_numbers = #tpu.dot_dimension_numbers<[1], [0], [0], [1], [0, 0, 1, 1], [], []>} : vector<8x256xf32>, vector<256x128xf32>, vector<8x128xf32> -> vector<8x128xf32>
    %c0_10 = arith.constant 0 : index
    %c0_11 = arith.constant 0 : index
    %9 = vector.load %arg5[%c0_10, %c0_11] : memref<8x128xf32, #tpu.memory_space<vmem>>, vector<8x128xf32>
    %10 = arith.addf %8, %9 : vector<8x128xf32>
    %11 = math.tanh %10 : vector<8x128xf32>
    %c0_12 = arith.constant 0 : index
    %c128 = arith.constant 128 : index
    %12 = vector.load %arg10[%c0_12, %c128] : memref<8x256xf32, #tpu.memory_space<vmem>>, vector<8x128xf32>
    tpu.vector_store %arg10[%c0_12, %c128], %11 {strides = array<i32>} : memref<8x256xf32, #tpu.memory_space<vmem>>, vector<8x128xf32>,
    %c0_13 = arith.constant 0 : index
    %c0_14 = arith.constant 0 : index
    %13 = vector.load %arg6[%c0_13, %c0_14] : memref<128x128xf32, #tpu.memory_space<vmem>>, vector<128x128xf32>
    %cst_15 = arith.constant dense<0.000000e+00> : vector<8x128xf32>
    %14 = tpu.matmul %11, %13, %cst_15 {dimension_numbers = #tpu.dot_dimension_numbers<[1], [0], [0], [1], [0, 0, 1, 1], [], []>} : vector<8x128xf32>, vector<128x128xf32>, vector<8x128xf32> -> vector<8x128xf32>
    %c0_16 = arith.constant 0 : index
    %c0_17 = arith.constant 0 : index
    %15 = vector.load %arg7[%c0_16, %c0_17] : memref<8x128xf32, #tpu.memory_space<vmem>>, vector<8x128xf32>
    %16 = arith.addf %14, %15 : vector<8x128xf32>
    %cst_18 = arith.constant dense<0xFF800000> : vector<8xf32>
    %17 = vector.multi_reduction <maximumf>, %16, %cst_18 [1] : vector<8x128xf32> to vector<8xf32>
    %18 = vector.shape_cast %17 : vector<8xf32> to vector<8x1xf32>
    %19 = vector.broadcast %18 : vector<8x1xf32> to vector<8x128xf32>
    %20 = arith.subf %16, %19 : vector<8x128xf32>
    %21 = math.exp %20 : vector<8x128xf32>
    %cst_19 = arith.constant dense<0.000000e+00> : vector<8xf32>
    %22 = vector.multi_reduction <add>, %21, %cst_19 [1] : vector<8x128xf32> to vector<8xf32>
    %23 = vector.shape_cast %22 : vector<8xf32> to vector<8x1xf32>
    %24 = math.log %23 : vector<8x1xf32>
    %25 = vector.broadcast %24 : vector<8x1xf32> to vector<8x128xf32>
    %26 = arith.subf %20, %25 : vector<8x128xf32>
    %c0_20 = arith.constant 0 : index
    %c0_21 = arith.constant 0 : index
    %c0_22 = arith.constant 0 : index
    %c0_23 = arith.constant 0 : index
    %27 = vector.load %arg8[%c0_20, %c0_21, %c0_22, %c0_23] : memref<1x1x8x128xf32, #tpu.memory_space<vmem>>, vector<1x1x8x128xf32>
    %28 = vector.shape_cast %27 : vector<1x1x8x128xf32> to vector<8x128xf32>
    %29 = vector.shape_cast %26 : vector<8x128xf32> to vector<1x1x8x128xf32>
    tpu.vector_store %arg8[%c0_20, %c0_21, %c0_22, %c0_23], %29 {strides = array<i32>} : memref<1x1x8x128xf32, #tpu.memory_space<vmem>>, vector<1x1x8x128xf32>,
    %c7_i32 = arith.constant 7 : i32
    %30 = arith.cmpi eq, %arg1, %c7_i32 : i32
    %31 = arith.extui %30 : i1 to i32
    %c0_i32_24 = arith.constant 0 : i32
    %32 = arith.cmpi ne, %31, %c0_i32_24 : i32
    scf.if %32 {
      %c0_25 = arith.constant 0 : index
      %c0_26 = arith.constant 0 : index
      %c0_27 = arith.constant 0 : index
      %33 = vector.load %arg9[%c0_25, %c0_26, %c0_27] : memref<1x8x128xf32, #tpu.memory_space<vmem>>, vector<1x8x128xf32>
      %34 = vector.shape_cast %33 : vector<1x8x128xf32> to vector<8x128xf32>
      %35 = vector.shape_cast %11 : vector<8x128xf32> to vector<1x8x128xf32>
      tpu.vector_store %arg9[%c0_25, %c0_26, %c0_27], %35 {strides = array<i32>} : memref<1x8x128xf32, #tpu.memory_space<vmem>>, vector<1x8x128xf32>,
    } else {
    }
    return
  }
  func.func @transform_0(%arg0: i32, %arg1: i32) -> (i32, i32, i32, i32) {
    %c0_i32 = arith.constant 0 : i32
    %c0_i32_0 = arith.constant 0 : i32
    %c0_i32_1 = arith.constant 0 : i32
    return %arg0, %arg1, %c0_i32, %c0_i32_0 : i32, i32, i32, i32
  }
  func.func @transform_1(%arg0: i32, %arg1: i32) -> (i32, i32) {
    %c0_i32 = arith.constant 0 : i32
    %c0_i32_0 = arith.constant 0 : i32
    %c0_i32_1 = arith.constant 0 : i32
    return %c0_i32, %c0_i32_0 : i32, i32
  }
  func.func @transform_2(%arg0: i32, %arg1: i32) -> (i32, i32) {
    %c0_i32 = arith.constant 0 : i32
    %c0_i32_0 = arith.constant 0 : i32
    %c0_i32_1 = arith.constant 0 : i32
    return %c0_i32, %c0_i32_0 : i32, i32
  }
  func.func @transform_3(%arg0: i32, %arg1: i32) -> (i32, i32) {
    %c0_i32 = arith.constant 0 : i32
    %c0_i32_0 = arith.constant 0 : i32
    %c0_i32_1 = arith.constant 0 : i32
    return %c0_i32, %c0_i32_0 : i32, i32
  }
  func.func @transform_4(%arg0: i32, %arg1: i32) -> (i32, i32) {
    %c0_i32 = arith.constant 0 : i32
    %c0_i32_0 = arith.constant 0 : i32
    %c0_i32_1 = arith.constant 0 : i32
    return %c0_i32, %c0_i32_0 : i32, i32
  }
  func.func @transform_5(%arg0: i32, %arg1: i32) -> (i32, i32) {
    %c0_i32 = arith.constant 0 : i32
    %c0_i32_0 = arith.constant 0 : i32
    %c0_i32_1 = arith.constant 0 : i32
    return %c0_i32, %c0_i32_0 : i32, i32
  }
  func.func @transform_6(%arg0: i32, %arg1: i32) -> (i32, i32, i32, i32) {
    %c0_i32 = arith.constant 0 : i32
    %c0_i32_0 = arith.constant 0 : i32
    %c0_i32_1 = arith.constant 0 : i32
    return %arg0, %arg1, %c0_i32, %c0_i32_0 : i32, i32, i32, i32
  }
  func.func @transform_7(%arg0: i32, %arg1: i32) -> (i32, i32, i32) {
    %c0_i32 = arith.constant 0 : i32
    %c0_i32_0 = arith.constant 0 : i32
    %c0_i32_1 = arith.constant 0 : i32
    return %arg0, %c0_i32, %c0_i32_0 : i32, i32, i32
  }
}

</mosaic_0001>

<llo_original>
// kernel: tpu_custom_call.1
$region0: #{tpu_custom_call.1}
  #allocation0 [shape = 'u32[]', space=smem, size = 0x4, offset = 0x4, fixed_abs, tag = 'smem constant byte address 0x4 - core index']
  #allocation1 [shape = 'u32[144,128]{1,0:T(1,128)}', space=vmem, size = 0x12000, scoped, tag = 'internal scratch']
  #allocation2 [shape = 'f32[8,256]{1,0:T(8,128)}', space=vmem, size = 0x2000, scoped, tag = 'scratch operand']
  %s0 = inlined_call_operand.hbm [shape: f32[2,8,8,128], index: 0, kind: input, shape index: {}]
  %s1 = inlined_call_operand.hbm [shape: f32[8,128], index: 1, kind: input, shape index: {}]
  %s2 = inlined_call_operand.hbm [shape: f32[256,128], index: 2, kind: input, shape index: {}]
  %s3 = inlined_call_operand.vmem [shape: f32[8,128], index: 3, kind: input, shape index: {}]
  %s4 = inlined_call_operand.hbm [shape: f32[128,128], index: 4, kind: input, shape index: {}]
  %s5 = inlined_call_operand.vmem [shape: f32[8,128], index: 5, kind: input, shape index: {}]
  %s6 = inlined_call_operand.hbm [shape: f32[2,8,8,128], index: 6, kind: output, shape index: {0}]
  %s7 = inlined_call_operand.hbm [shape: f32[2,8,128], index: 7, kind: output, shape index: {1}]
  %8 = xla_tuple %s6, %s7
  %s9 = sld [smem:[#allocation0]]
  $region89: #{tpu_custom_call.1} parent=0
    _
  %s11 = ssub.s32 1, %s9
  %s12 = scalar_select 0, %s11, %s9
  $region1: #{tpu_custom_call.1} parent=0
    #allocation3 [shape = 'u8[8192]{0}', space=vmem, size = 0x2000, scoped, tag = 'input window, operand 0']
    #allocation4 [shape = 's32[2]{0}', space=sflag, size = 0x8, scoped, tag = 'scoped memory for tpu_custom_call.1']
    #allocation5 [shape = 's32[2]{0}', space=sflag, size = 0x8, scoped, tag = 'scoped memory for tpu_custom_call.1']
    #allocation6 [shape = 'u8[4096]{0}', space=vmem, size = 0x1000, scoped, tag = 'input window, operand 1, single buffered']
    #allocation7 [shape = 's32[1]{0}', space=sflag, size = 0x4, scoped, tag = 'scoped memory for tpu_custom_call.1']
    #allocation8 [shape = 'u8[131072]{0}', space=vmem, size = 0x20000, scoped, tag = 'input window, operand 2, single buffered']
    #allocation9 [shape = 'u8[65536]{0}', space=vmem, size = 0x10000, scoped, tag = 'input window, operand 4, single buffered']
    #allocation10 [shape = 's32[1]{0}', space=sflag, size = 0x4, scoped, tag = 'scoped memory for tpu_custom_call.1']
    #allocation11 [shape = 'u8[8192]{0}', space=vmem, size = 0x2000, scoped, tag = 'output window, operand 0']
    #allocation12 [shape = 'u8[8192]{0}', space=vmem, size = 0x2000, scoped, tag = 'output window, operand 1']
    #allocation13 [shape = 's32[2]{0}', space=sflag, size = 0x8, scoped, tag = 'scoped memory for tpu_custom_call.1']
    %13 = vsyncpa [#allocation4], 0
    %s14 = scalar_lea.sflag [#allocation4], 1
    %15 = vsyncpa %s14, 0
    %16 = vsyncpa [#allocation7], 0
    %17 = vsyncpa [#allocation10], 0
    %18 = vsyncpa [#allocation5], 0
    %s19 = scalar_lea.sflag [#allocation5], 1
    %20 = vsyncpa %s19, 0
    %21 = vsyncpa [#allocation13], 0
    %s22 = scalar_lea.sflag [#allocation13], 1
    %23 = vsyncpa %s22, 0
    loop: start=0, step=1, limit=18
    $region2: #{tpu_custom_call.1} parent=1 // loop_pre_header
      _
    $region3: #{tpu_custom_call.1} parent=1 // loop_header
      %s25 = sphi 0, %s29
      %p26 = scmp.ge.s32.totalorder %s25, 18
      %s32 = sphi 0, %s44
      %s33 = sphi 0, %s40
      %s34 = sphi 0, %s32
      %s35 = sphi 0, %s33
      %s36 = sphi 0, %s34
      %s37 = sphi 0, %s35
      %s49 = sphi 0, %s51
      %s52 = sphi 0, %s49
      %s53 = sphi 0, %s52
      %s69 = sphi 0, %s53
      %s73 = sphi 0, %s73
      %s75 = sphi 0, %s73
      %s76 = sphi 0, %s75
      %s90 = sphi 0, %s76
      %s94 = sphi 0, %s94
      %s96 = sphi 0, %s94
      %s97 = sphi 0, %s96
      %s111 = sphi 0, %s97
      %s115 = sphi 0, %s115
      %s117 = sphi 0, %s115
      %s118 = sphi 0, %s117
      %s132 = sphi 0, %s118
      %s136 = sphi 0, %s136
      %s138 = sphi 0, %s136
      %s139 = sphi 0, %s138
      %s153 = sphi 0, %s139
      %s157 = sphi 0, %s157
      %s159 = sphi 0, %s157
      %s160 = sphi 0, %s159
      %s174 = sphi 0, %s160
      %s182 = sphi 0, %s184
      %s185 = sphi 0, %s182
      %s186 = sphi 0, %s185
      %s202 = sphi 0, %s186
      %s208 = sphi 0, %s210
      %s211 = sphi 0, %s208
      %s212 = sphi 0, %s211
      %s228 = sphi 0, %s212
    $region4: #{tpu_custom_call.1} parent=1 // loop_header_branch
      %28 = sbr.rel (%p26) target = $region8
    $region5: #{tpu_custom_call.1} parent=1 // loop_body
      %s30 = ssub.s32 %s25, 1
      %s31 = ssub.s32 %s25, 2
      %s38 = sadd.s32 1, %s33
      %p39 = scmp.ge.s32.totalorder %s38, 8
      %s40 = scalar_select %p39, 0, %s38
      %s41 = sadd.s32 1, %s32
      %s42 = scalar_select %p39, %s41, %s32
      %p43 = scmp.ge.s32.totalorder %s42, 2
      %s44 = scalar_select %p43, 0, %s42
      %s45 = ssub.s32 %s32, %s44
      %s46 = ssub.s32 %s33, %s40
      %s47 = sor.u32 %s45, %s46
      %p48 = scmp.eq.s32.totalorder %s47, 0
      %s50 = sadd.s32 %s49, 1
      %s51 = scalar_select %p48, %s49, %s50
      %p54 = pneg %p48
      %p55 = scmp.eq.s32.totalorder %s25, 15
      %p56 = por %p54, %p55
      %p57 = scmp.ne.s32.totalorder %s49, %s52
      %p58 = scmp.eq.s32.totalorder %s25, 0
      %p59 = por %p57, %p58
      %p60 = scmp.ne.s32.totalorder %s49, %s52
      %p61 = scmp.eq.s32.totalorder %s30, 15
      %p62 = por %p60, %p61
      %p63 = scmp.ne.s32.totalorder %s52, %s53
      %p64 = scmp.eq.s32.totalorder %s30, 0
      %p65 = por %p63, %p64
      %p66 = scmp.ne.s32.totalorder %s52, %s53
      %p67 = scmp.eq.s32.totalorder %s31, 15
      %p68 = por %p66, %p67
      %p70 = scmp.ne.s32.totalorder %s53, %s69
      %p71 = scmp.eq.s32.totalorder %s31, 0
      %p72 = por %p70, %p71
      %s74 = sadd.s32 %s73, 1
      %p77 = scmp.eq.s32.totalorder %s25, 15
      %p78 = scmp.ne.s32.totalorder %s73, %s75
      %p79 = scmp.eq.s32.totalorder %s25, 0
      %p80 = por %p78, %p79
      %p81 = scmp.ne.s32.totalorder %s73, %s75
      %p82 = scmp.eq.s32.totalorder %s30, 15
      %p83 = por %p81, %p82
      %p84 = scmp.ne.s32.totalorder %s75, %s76
      %p85 = scmp.eq.s32.totalorder %s30, 0
      %p86 = por %p84, %p85
      %p87 = scmp.ne.s32.totalorder %s75, %s76
      %p88 = scmp.eq.s32.totalorder %s31, 15
      %p89 = por %p87, %p88
      %p91 = scmp.ne.s32.totalorder %s76, %s90
      %p92 = scmp.eq.s32.totalorder %s31, 0
      %p93 = por %p91, %p92
      %s95 = sadd.s32 %s94, 1
      %p98 = scmp.eq.s32.totalorder %s25, 15
      %p99 = scmp.ne.s32.totalorder %s94, %s96
      %p100 = scmp.eq.s32.totalorder %s25, 0
      %p101 = por %p99, %p100
      %p102 = scmp.ne.s32.totalorder %s94, %s96
      %p103 = scmp.eq.s32.totalorder %s30, 15
      %p104 = por %p102, %p103
      %p105 = scmp.ne.s32.totalorder %s96, %s97
      %p106 = scmp.eq.s32.totalorder %s30, 0
      %p107 = por %p105, %p106
      %p108 = scmp.ne.s32.totalorder %s96, %s97
      %p109 = scmp.eq.s32.totalorder %s31, 15
      %p110 = por %p108, %p109
      %p112 = scmp.ne.s32.totalorder %s97, %s111
      %p113 = scmp.eq.s32.totalorder %s31, 0
      %p114 = por %p112, %p113
      %s116 = sadd.s32 %s115, 1
      %p119 = scmp.eq.s32.totalorder %s25, 15
      %p120 = scmp.ne.s32.totalorder %s115, %s117
      %p121 = scmp.eq.s32.totalorder %s25, 0
      %p122 = por %p120, %p121
      %p123 = scmp.ne.s32.totalorder %s115, %s117
      %p124 = scmp.eq.s32.totalorder %s30, 15
      %p125 = por %p123, %p124
      %p126 = scmp.ne.s32.totalorder %s117, %s118
      %p127 = scmp.eq.s32.totalorder %s30, 0
      %p128 = por %p126, %p127
      %p129 = scmp.ne.s32.totalorder %s117, %s118
      %p130 = scmp.eq.s32.totalorder %s31, 15
      %p131 = por %p129, %p130
      %p133 = scmp.ne.s32.totalorder %s118, %s132
      %p134 = scmp.eq.s32.totalorder %s31, 0
      %p135 = por %p133, %p134
      %s137 = sadd.s32 %s136, 1
      %p140 = scmp.eq.s32.totalorder %s25, 15
      %p141 = scmp.ne.s32.totalorder %s136, %s138
      %p142 = scmp.eq.s32.totalorder %s25, 0
      %p143 = por %p141, %p142
      %p144 = scmp.ne.s32.totalorder %s136, %s138
      %p145 = scmp.eq.s32.totalorder %s30, 15
      %p146 = por %p144, %p145
      %p147 = scmp.ne.s32.totalorder %s138, %s139
      %p148 = scmp.eq.s32.totalorder %s30, 0
      %p149 = por %p147, %p148
      %p150 = scmp.ne.s32.totalorder %s138, %s139
      %p151 = scmp.eq.s32.totalorder %s31, 15
      %p152 = por %p150, %p151
      %p154 = scmp.ne.s32.totalorder %s139, %s153
      %p155 = scmp.eq.s32.totalorder %s31, 0
      %p156 = por %p154, %p155
      %s158 = sadd.s32 %s157, 1
      %p161 = scmp.eq.s32.totalorder %s25, 15
      %p162 = scmp.ne.s32.totalorder %s157, %s159
      %p163 = scmp.eq.s32.totalorder %s25, 0
      %p164 = por %p162, %p163
      %p165 = scmp.ne.s32.totalorder %s157, %s159
      %p166 = scmp.eq.s32.totalorder %s30, 15
      %p167 = por %p165, %p166
      %p168 = scmp.ne.s32.totalorder %s159, %s160
      %p169 = scmp.eq.s32.totalorder %s30, 0
      %p170 = por %p168, %p169
      %p171 = scmp.ne.s32.totalorder %s159, %s160
      %p172 = scmp.eq.s32.totalorder %s31, 15
      %p173 = por %p171, %p172
      %p175 = scmp.ne.s32.totalorder %s160, %s174
      %p176 = scmp.eq.s32.totalorder %s31, 0
      %p177 = por %p175, %p176
      %s178 = ssub.s32 %s32, %s44
      %s179 = ssub.s32 %s33, %s40
      %s180 = sor.u32 %s178, %s179
      %p181 = scmp.eq.s32.totalorder %s180, 0
      %s183 = sadd.s32 %s182, 1
      %s184 = scalar_select %p181, %s182, %s183
      %p187 = pneg %p181
      %p188 = scmp.eq.s32.totalorder %s25, 15
      %p189 = por %p187, %p188
      %p190 = scmp.ne.s32.totalorder %s182, %s185
      %p191 = scmp.eq.s32.totalorder %s25, 0
      %p192 = por %p190, %p191
      %p193 = scmp.ne.s32.totalorder %s182, %s185
      %p194 = scmp.eq.s32.totalorder %s30, 15
      %p195 = por %p193, %p194
      %p196 = scmp.ne.s32.totalorder %s185, %s186
      %p197 = scmp.eq.s32.totalorder %s30, 0
      %p198 = por %p196, %p197
      %p199 = scmp.ne.s32.totalorder %s185, %s186
      %p200 = scmp.eq.s32.totalorder %s31, 15
      %p201 = por %p199, %p200
      %p203 = scmp.ne.s32.totalorder %s186, %s202
      %p204 = scmp.eq.s32.totalorder %s31, 0
      %p205 = por %p203, %p204
      %s206 = ssub.s32 %s32, %s44
      %p207 = scmp.eq.s32.totalorder %s206, 0
      %s209 = sadd.s32 %s208, 1
      %s210 = scalar_select %p207, %s208, %s209
      %p213 = pneg %p207
      %p214 = scmp.eq.s32.totalorder %s25, 15
      %p215 = por %p213, %p214
      %p216 = scmp.ne.s32.totalorder %s208, %s211
      %p217 = scmp.eq.s32.totalorder %s25, 0
      %p218 = por %p216, %p217
      %p219 = scmp.ne.s32.totalorder %s208, %s211
      %p220 = scmp.eq.s32.totalorder %s30, 15
      %p221 = por %p219, %p220
      %p222 = scmp.ne.s32.totalorder %s211, %s212
      %p223 = scmp.eq.s32.totalorder %s30, 0
      %p224 = por %p222, %p223
      %p225 = scmp.ne.s32.totalorder %s211, %s212
      %p226 = scmp.eq.s32.totalorder %s31, 15
      %p227 = por %p225, %p226
      %p229 = scmp.ne.s32.totalorder %s212, %s228
      %p230 = scmp.eq.s32.totalorder %s31, 0
      %p231 = por %p229, %p230
      %p232 = scmp.le.s32.totalorder 1, %s25
      %p233 = scmp.lt.s32.totalorder %s25, 17
      %p234 = pnand %p232, %p233
      %p235 = pneg %p234
      // Predicated region
      $region9: #{tpu_custom_call.1} parent=5 // pred_check
        _
      $region10: #{tpu_custom_call.1} parent=5 // pred_check_branch
        %237 = sbr.rel (%p234) target = $region12
      $region11: #{tpu_custom_call.1} parent=5 // pred_region
        %s238 = ssub.s32 %s25, 1
        // Predicated region
        $region13: #{tpu_custom_call.1} parent=11 // pred_check
          %p239 = pneg %p86
        $region14: #{tpu_custom_call.1} parent=11 // pred_check_branch
          %241 = sbr.rel (%p239) target = $region16
        $region15: #{tpu_custom_call.1} parent=11 // pred_region
          %s243 = ssub.s32 128, 128
          %244 = vsyncadd [#allocation7], %s243
          %s246 = sshll.u32 [#allocation6], 4
          %s247 = int_to_ptr.vmem [resolvable:$true] %s246
          %249 = dma.hbm_to_vmem [thread:$0]  %s1, 128, %s247, [#allocation7]
        $region16: #{tpu_custom_call.1} parent=11 // pred_fallthru
          _
        // Predicated region
        $region17: #{tpu_custom_call.1} parent=11 // pred_check
          %p250 = pneg %p107
        $region18: #{tpu_custom_call.1} parent=11 // pred_check_branch
          %252 = sbr.rel (%p250) target = $region20
        $region19: #{tpu_custom_call.1} parent=11 // pred_region
          %s254 = ssub.s32 4096, 4096
          %255 = vsyncadd [#allocation7], %s254
          %s256 = sshll.u32 [#allocation8], 4
          %s257 = int_to_ptr.vmem [resolvable:$true] %s256
          %262 = dma.hbm_to_vmem [thread:$0]  %s2, 4096, %s257, [#allocation7], 128, 128, 8
        $region20: #{tpu_custom_call.1} parent=11 // pred_fallthru
          _
        // Predicated region
        $region21: #{tpu_custom_call.1} parent=11 // pred_check
          %p263 = pneg %p128
        $region22: #{tpu_custom_call.1} parent=11 // pred_check_branch
          %265 = sbr.rel (%p263) target = $region24
        $region23: #{tpu_custom_call.1} parent=11 // pred_region
          _
        $region24: #{tpu_custom_call.1} parent=11 // pred_fallthru
          _
        // Predicated region
        $region25: #{tpu_custom_call.1} parent=11 // pred_check
          %p266 = pneg %p149
        $region26: #{tpu_custom_call.1} parent=11 // pred_check_branch
          %268 = sbr.rel (%p266) target = $region28
        $region27: #{tpu_custom_call.1} parent=11 // pred_region
          %s270 = ssub.s32 2048, 2048
          %271 = vsyncadd [#allocation10], %s270
          %s272 = sshll.u32 [#allocation9], 4
          %s273 = int_to_ptr.vmem [resolvable:$true] %s272
          %278 = dma.hbm_to_vmem [thread:$0]  %s4, 2048, %s273, [#allocation10], 128, 128, 8
        $region28: #{tpu_custom_call.1} parent=11 // pred_fallthru
          _
        // Predicated region
        $region29: #{tpu_custom_call.1} parent=11 // pred_check
          %p279 = pneg %p170
        $region30: #{tpu_custom_call.1} parent=11 // pred_check_branch
          %281 = sbr.rel (%p279) target = $region32
        $region31: #{tpu_custom_call.1} parent=11 // pred_region
          _
        $region32: #{tpu_custom_call.1} parent=11 // pred_fallthru
          _
      $region12: #{tpu_custom_call.1} parent=5 // pred_fallthru
        _
      %p282 = scmp.lt.s32.totalorder %s25, 16
      // Predicated region
      $region33: #{tpu_custom_call.1} parent=5 // pred_check
        %p283 = pneg %p282
      $region34: #{tpu_custom_call.1} parent=5 // pred_check_branch
        %285 = sbr.rel (%p283) target = $region36
      $region35: #{tpu_custom_call.1} parent=5 // pred_region
        // Predicated region
        $region37: #{tpu_custom_call.1} parent=35 // pred_check
          %p286 = pneg %p59
        $region38: #{tpu_custom_call.1} parent=35 // pred_check_branch
          %288 = sbr.rel (%p286) target = $region40
        $region39: #{tpu_custom_call.1} parent=35 // pred_region
          %s289 = sand.u32 %s49, 1
          %s290 = scalar_lea.sflag [#allocation4], %s289
          %s291 = sand.u32 %s49, 1
          %s292 = smul.addr %s291, 8
          %s293 = scalar_lea.vmem [#allocation3], %s292
          %s295 = ssub.s32 128, 128
          %296 = vsyncadd %s290, %s295
          %s297 = smul.addr %s32, 8
          %s298 = sadd.s32 %s33, %s297
          %s299 = smul.addr %s298, 128
          %s300 = scalar_lea.hbm %s0, %s299
          %s302 = sshll.u32 %s293, 4
          %s303 = int_to_ptr.vmem [resolvable:$true] %s302
          %305 = dma.hbm_to_vmem [thread:$0]  %s300, 128, %s303, %s290
        $region40: #{tpu_custom_call.1} parent=35 // pred_fallthru
          _
      $region36: #{tpu_custom_call.1} parent=5 // pred_fallthru
        _
      %p306 = scmp.le.s32.totalorder 1, %s25
      %p307 = scmp.lt.s32.totalorder %s25, 17
      %p308 = pnand %p306, %p307
      %p309 = pneg %p308
      // Predicated region
      $region41: #{tpu_custom_call.1} parent=5 // pred_check
        _
      $region42: #{tpu_custom_call.1} parent=5 // pred_check_branch
        %311 = sbr.rel (%p308) target = $region44
      $region43: #{tpu_custom_call.1} parent=5 // pred_region
        %s312 = ssub.s32 %s25, 1
        %s313 = sand.u32 %s52, 1
        %s314 = scalar_lea.sflag [#allocation4], %s313
        %s315 = sand.u32 %s52, 1
        %s316 = smul.addr %s315, 8
        %s317 = scalar_lea.vmem [#allocation3], %s316
        // Predicated region
        $region45: #{tpu_custom_call.1} parent=43 // pred_check
          %p318 = pneg %p65
        $region46: #{tpu_custom_call.1} parent=43 // pred_check_branch
          %320 = sbr.rel (%p318) target = $region48
        $region47: #{tpu_custom_call.1} parent=43 // pred_region
          %321 = dma.done %s314, 128
        $region48: #{tpu_custom_call.1} parent=43 // pred_fallthru
          _
        // Predicated region
        $region49: #{tpu_custom_call.1} parent=43 // pred_check
          %p322 = pneg %p86
        $region50: #{tpu_custom_call.1} parent=43 // pred_check_branch
          %324 = sbr.rel (%p322) target = $region52
        $region51: #{tpu_custom_call.1} parent=43 // pred_region
          %325 = dma.done [#allocation7], 128
        $region52: #{tpu_custom_call.1} parent=43 // pred_fallthru
          _
        // Predicated region
        $region53: #{tpu_custom_call.1} parent=43 // pred_check
          %p326 = pneg %p107
        $region54: #{tpu_custom_call.1} parent=43 // pred_check_branch
          %328 = sbr.rel (%p326) target = $region56
        $region55: #{tpu_custom_call.1} parent=43 // pred_region
          %329 = dma.done [#allocation7], 4096
        $region56: #{tpu_custom_call.1} parent=43 // pred_fallthru
          _
        // Predicated region
        $region57: #{tpu_custom_call.1} parent=43 // pred_check
          %p330 = pneg %p149
        $region58: #{tpu_custom_call.1} parent=43 // pred_check_branch
          %332 = sbr.rel (%p330) target = $region60
        $region59: #{tpu_custom_call.1} parent=43 // pred_region
          %333 = dma.done [#allocation10], 2048
        $region60: #{tpu_custom_call.1} parent=43 // pred_fallthru
          _
        %s334 = sand.u32 %s52, 1
        %s335 = scalar_lea.sflag [#allocation4], %s334
        %s336 = sand.u32 %s52, 1
        %s337 = smul.addr %s336, 8
        %s338 = scalar_lea.vmem [#allocation3], %s337
        %p339 = pneg %p65
        %p340 = pneg %p62
        %p341 = pneg %p86
        %p342 = pneg %p83
        %p343 = pneg %p107
        %p344 = pneg %p104
        %p345 = pneg %p128
        %p346 = pneg %p125
        %p347 = pneg %p149
        %p348 = pneg %p146
        %p349 = pneg %p170
        %p350 = pneg %p167
        %p351 = pneg %p198
        %p352 = pneg %p195
        %s353 = sand.u32 %s185, 1
        %s354 = scalar_lea.sflag [#allocation5], %s353
        %s355 = sand.u32 %s185, 1
        %s356 = smul.addr %s355, 8
        %s357 = scalar_lea.vmem [#allocation11], %s356
        %p358 = pneg %p224
        %p359 = pneg %p221
        %s360 = sand.u32 %s211, 1
        %s361 = scalar_lea.sflag [#allocation13], %s360
        %s362 = sand.u32 %s211, 1
        %s363 = smul.addr %s362, 8
        %s364 = scalar_lea.vmem [#allocation12], %s363
        %p365 = scmp.eq.s32.totalorder %s35, 0
        // Predicated region
        $region61: #{tpu_custom_call.1} parent=43 // pred_check
          %p366 = pneg %p365
        $region62: #{tpu_custom_call.1} parent=43 // pred_check_branch
          %368 = sbr.rel (%p366) target = $region64
        $region63: #{tpu_custom_call.1} parent=43 // pred_region
          %v369 = vld [vmem:[#allocation6] sm:$0xff]
          %370 = vst [vmem:[#allocation2 + $0x8] sm:$0xff] %v369
        $region64: #{tpu_custom_call.1} parent=43 // pred_fallthru
          _
        %v371 = vld [vmem:[%s317] sm:$0xff]
        %372 = vst [vmem:[#allocation2] sm:$0xff] %v371
        %v373 = vld [vmem:[#allocation2] sm:$0xff]
        %v374 = vld [vmem:[#allocation2 + $0x8] sm:$0xff]
        %v375 = vld [vmem:[#allocation8] sm:$0xff]
        %v376 = vld [vmem:[#allocation8 + $0x8] sm:$0xff]
        %v377 = vld [vmem:[#allocation8 + $0x10] sm:$0xff]
        %v378 = vld [vmem:[#allocation8 + $0x18] sm:$0xff]
        %v379 = vld [vmem:[#allocation8 + $0x20] sm:$0xff]
        %v380 = vld [vmem:[#allocation8 + $0x28] sm:$0xff]
        %v381 = vld [vmem:[#allocation8 + $0x30] sm:$0xff]
        %v382 = vld [vmem:[#allocation8 + $0x38] sm:$0xff]
        %v383 = vld [vmem:[#allocation8 + $0x40] sm:$0xff]
        %v384 = vld [vmem:[#allocation8 + $0x48] sm:$0xff]
        %v385 = vld [vmem:[#allocation8 + $0x50] sm:$0xff]
        %v386 = vld [vmem:[#allocation8 + $0x58] sm:$0xff]
        %v387 = vld [vmem:[#allocation8 + $0x60] sm:$0xff]
        %v388 = vld [vmem:[#allocation8 + $0x68] sm:$0xff]
        %v389 = vld [vmem:[#allocation8 + $0x70] sm:$0xff]
        %v390 = vld [vmem:[#allocation8 + $0x78] sm:$0xff]
        %v391 = vld [vmem:[#allocation8 + $0x80] sm:$0xff]
        %v392 = vld [vmem:[#allocation8 + $0x88] sm:$0xff]
        %v393 = vld [vmem:[#allocation8 + $0x90] sm:$0xff]
        %v394 = vld [vmem:[#allocation8 + $0x98] sm:$0xff]
        %v395 = vld [vmem:[#allocation8 + $0xa0] sm:$0xff]
        %v396 = vld [vmem:[#allocation8 + $0xa8] sm:$0xff]
        %v397 = vld [vmem:[#allocation8 + $0xb0] sm:$0xff]
        %v398 = vld [vmem:[#allocation8 + $0xb8] sm:$0xff]
        %v399 = vld [vmem:[#allocation8 + $0xc0] sm:$0xff]
        %v400 = vld [vmem:[#allocation8 + $0xc8] sm:$0xff]
        %v401 = vld [vmem:[#allocation8 + $0xd0] sm:$0xff]
        %v402 = vld [vmem:[#allocation8 + $0xd8] sm:$0xff]
        %v403 = vld [vmem:[#allocation8 + $0xe0] sm:$0xff]
        %v404 = vld [vmem:[#allocation8 + $0xe8] sm:$0xff]
        %v405 = vld [vmem:[#allocation8 + $0xf0] sm:$0xff]
        %v406 = vld [vmem:[#allocation8 + $0xf8] sm:$0xff]
        %v407 = vld [vmem:[%s3] sm:$0xff]
        %408 = vmatprep.subr.mxu0 0.0
        %409 = vmatpush1.msra.mxu0 %v375
        %410 = vmatprep.subr.mxu0 0.0
        %411 = vmatpush1.msra.mxu0 %v376
        %412 = vmatprep.subr.mxu0 0.0
        %413 = vmatpush1.msra.mxu0 %v377
        %414 = vmatprep.subr.mxu0 0.0
        %415 = vmatpush1.msra.mxu0 %v378
        %416 = vmatprep.subr.mxu0 0.0
        %417 = vmatpush1.msra.mxu0 %v379
        %418 = vmatprep.subr.mxu0 0.0
        %419 = vmatpush1.msra.mxu0 %v380
        %420 = vmatprep.subr.mxu0 0.0
        %421 = vmatpush1.msra.mxu0 %v381
        %422 = vmatprep.subr.mxu0 0.0
        %423 = vmatpush1.msra.mxu0 %v382
        %424 = vmatprep.subr.mxu0 0.0
        %425 = vmatpush1.msra.mxu0 %v383
        %426 = vmatprep.subr.mxu0 0.0
        %427 = vmatpush1.msra.mxu0 %v384
        %428 = vmatprep.subr.mxu0 0.0
        %429 = vmatpush1.msra.mxu0 %v385
        %430 = vmatprep.subr.mxu0 0.0
        %431 = vmatpush1.msra.mxu0 %v386
        %432 = vmatprep.subr.mxu0 0.0
        %433 = vmatpush1.msra.mxu0 %v387
        %434 = vmatprep.subr.mxu0 0.0
        %435 = vmatpush1.msra.mxu0 %v388
        %436 = vmatprep.subr.mxu0 0.0
        %437 = vmatpush1.msra.mxu0 %v389
        %438 = vmatprep.subr.mxu0 0.0
        %439 = vmatpush1.msra.mxu0 %v390
        %440 = vmatprep.subr.mxu0 0.0
        %441 = vmatpush1.msra.mxu0 %v391
        %442 = vmatprep.subr.mxu0 0.0
        %443 = vmatpush1.msra.mxu0 %v392
        %444 = vmatprep.subr.mxu0 0.0
        %445 = vmatpush1.msra.mxu0 %v393
        %446 = vmatprep.subr.mxu0 0.0
        %447 = vmatpush1.msra.mxu0 %v394
        %448 = vmatprep.subr.mxu0 0.0
        %449 = vmatpush1.msra.mxu0 %v395
        %450 = vmatprep.subr.mxu0 0.0
        %451 = vmatpush1.msra.mxu0 %v396
        %452 = vmatprep.subr.mxu0 0.0
        %453 = vmatpush1.msra.mxu0 %v397
        %454 = vmatprep.subr.mxu0 0.0
        %455 = vmatpush1.msra.mxu0 %v398
        %456 = vmatprep.subr.mxu0 0.0
        %457 = vmatpush1.msra.mxu0 %v399
        %458 = vmatprep.subr.mxu0 0.0
        %459 = vmatpush1.msra.mxu0 %v400
        %460 = vmatprep.subr.mxu0 0.0
        %461 = vmatpush1.msra.mxu0 %v401
        %462 = vmatprep.subr.mxu0 0.0
        %463 = vmatpush1.msra.mxu0 %v402
        %464 = vmatprep.subr.mxu0 0.0
        %465 = vmatpush1.msra.mxu0 %v403
        %466 = vmatprep.subr.mxu0 0.0
        %467 = vmatpush1.msra.mxu0 %v404
        %468 = vmatprep.subr.mxu0 0.0
        %469 = vmatpush1.msra.mxu0 %v405
        %470 = vmatprep.subr.mxu0 0.0
        %471 = vmatpush1.msra.mxu0 %v406
        %472 = vmatprep.mubr.f32.mxu0 %v374
        %473 = vmatmul.mubr.f32.gmra.mrb[0].mxu0 %v373
        %v474 = vpop.f32.mrb[0].mxu0
        %v475 = vadd.f32 %v407, %v474
        %v476 = vpop.f32.mrb[0].mxu0
        %477 = vdwg.mxu0
        %v478 = vtanh.pop %v475
        %479 = vst [vmem:[#allocation2 + $0x8] sm:$0xff] %v478
        %v480 = vld [vmem:[#allocation9] sm:$0xff]
        %v481 = vld [vmem:[#allocation9 + $0x8] sm:$0xff]
        %v482 = vld [vmem:[#allocation9 + $0x10] sm:$0xff]
        %v483 = vld [vmem:[#allocation9 + $0x18] sm:$0xff]
        %v484 = vld [vmem:[#allocation9 + $0x20] sm:$0xff]
        %v485 = vld [vmem:[#allocation9 + $0x28] sm:$0xff]
        %v486 = vld [vmem:[#allocation9 + $0x30] sm:$0xff]
        %v487 = vld [vmem:[#allocation9 + $0x38] sm:$0xff]
        %v488 = vld [vmem:[#allocation9 + $0x40] sm:$0xff]
        %v489 = vld [vmem:[#allocation9 + $0x48] sm:$0xff]
        %v490 = vld [vmem:[#allocation9 + $0x50] sm:$0xff]
        %v491 = vld [vmem:[#allocation9 + $0x58] sm:$0xff]
        %v492 = vld [vmem:[#allocation9 + $0x60] sm:$0xff]
        %v493 = vld [vmem:[#allocation9 + $0x68] sm:$0xff]
        %v494 = vld [vmem:[#allocation9 + $0x70] sm:$0xff]
        %v495 = vld [vmem:[#allocation9 + $0x78] sm:$0xff]
        %v496 = vld [vmem:[%s5] sm:$0xff]
        %497 = vmatprep.subr.mxu0 0.0
        %498 = vmatpush1.msra.mxu0 %v480
        %499 = vmatprep.subr.mxu0 0.0
        %500 = vmatpush1.msra.mxu0 %v481
        %501 = vmatprep.subr.mxu0 0.0
        %502 = vmatpush1.msra.mxu0 %v482
        %503 = vmatprep.subr.mxu0 0.0
        %504 = vmatpush1.msra.mxu0 %v483
        %505 = vmatprep.subr.mxu0 0.0
        %506 = vmatpush1.msra.mxu0 %v484
        %507 = vmatprep.subr.mxu0 0.0
        %508 = vmatpush1.msra.mxu0 %v485
        %509 = vmatprep.subr.mxu0 0.0
        %510 = vmatpush1.msra.mxu0 %v486
        %511 = vmatprep.subr.mxu0 0.0
        %512 = vmatpush1.msra.mxu0 %v487
        %513 = vmatprep.subr.mxu0 0.0
        %514 = vmatpush1.msra.mxu0 %v488
        %515 = vmatprep.subr.mxu0 0.0
        %516 = vmatpush1.msra.mxu0 %v489
        %517 = vmatprep.subr.mxu0 0.0
        %518 = vmatpush1.msra.mxu0 %v490
        %519 = vmatprep.subr.mxu0 0.0
        %520 = vmatpush1.msra.mxu0 %v491
        %521 = vmatprep.subr.mxu0 0.0
        %522 = vmatpush1.msra.mxu0 %v492
        %523 = vmatprep.subr.mxu0 0.0
        %524 = vmatpush1.msra.mxu0 %v493
        %525 = vmatprep.subr.mxu0 0.0
        %526 = vmatpush1.msra.mxu0 %v494
        %527 = vmatprep.subr.mxu0 0.0
        %528 = vmatpush1.msra.mxu0 %v495
        %529 = vmatprep.subr.mxu0 0.0
        %530 = vmatpush1.msra.mxu0 0.0
        %531 = vmatprep.subr.mxu0 0.0
        %532 = vmatpush1.msra.mxu0 0.0
        %533 = vmatprep.subr.mxu0 0.0
        %534 = vmatpush1.msra.mxu0 0.0
        %535 = vmatprep.subr.mxu0 0.0
        %536 = vmatpush1.msra.mxu0 0.0
        %537 = vmatprep.subr.mxu0 0.0
        %538 = vmatpush1.msra.mxu0 0.0
        %539 = vmatprep.subr.mxu0 0.0
        %540 = vmatpush1.msra.mxu0 0.0
        %541 = vmatprep.subr.mxu0 0.0
        %542 = vmatpush1.msra.mxu0 0.0
        %543 = vmatprep.subr.mxu0 0.0
        %544 = vmatpush1.msra.mxu0 0.0
        %545 = vmatprep.subr.mxu0 0.0
        %546 = vmatpush1.msra.mxu0 0.0
        %547 = vmatprep.subr.mxu0 0.0
        %548 = vmatpush1.msra.mxu0 0.0
        %549 = vmatprep.subr.mxu0 0.0
        %550 = vmatpush1.msra.mxu0 0.0
        %551 = vmatprep.subr.mxu0 0.0
        %552 = vmatpush1.msra.mxu0 0.0
        %553 = vmatprep.subr.mxu0 0.0
        %554 = vmatpush1.msra.mxu0 0.0
        %555 = vmatprep.subr.mxu0 0.0
        %556 = vmatpush1.msra.mxu0 0.0
        %557 = vmatprep.subr.mxu0 0.0
        %558 = vmatpush1.msra.mxu0 0.0
        %559 = vmatprep.subr.mxu0 0.0
        %560 = vmatpush1.msra.mxu0 0.0
        %561 = vmatprep.mubr.f32.mxu0 0.0
        %562 = vmatmul.mubr.f32.gmra.mrb[0].mxu0 %v478
        %v563 = vpop.f32.mrb[0].mxu0
        %v564 = vadd.f32 %v496, %v563
        %v565 = vpop.f32.mrb[0].mxu0
        %566 = vdwg.mxu0
        %567 = vmax.xlane.f32.xlu0 %v564
        %v568 = vpop.xlane.xlu0 %567
        %v569 = vsub.f32 %v564, %v568
        %v570 = vmul.f32 %v569, 1.442695
        %v571 = vpow.pop %v570
        %572 = vadd.xlane.f32.xlu0 %v571
        %v573 = vpop.xlane.xlu0 %572
        %v574 = vlog2.pop %v573
        %v575 = vmul.f32 %v574, 0.6931472
        %v576 = vsub.f32 %v569, %v575
        %577 = vst [vmem:[%s357] sm:$0xff] %v576
        %p578 = scmp.eq.s32.totalorder %s35, 7
        // Predicated region
        $region65: #{tpu_custom_call.1} parent=43 // pred_check
          %p579 = pneg %p578
        $region66: #{tpu_custom_call.1} parent=43 // pred_check_branch
          %581 = sbr.rel (%p579) target = $region68
        $region67: #{tpu_custom_call.1} parent=43 // pred_region
          %582 = vst [vmem:[%s364] sm:$0xff] %v478
        $region68: #{tpu_custom_call.1} parent=43 // pred_fallthru
          _
        %s583 = sand.u32 %s185, 1
        %s584 = scalar_lea.sflag [#allocation5], %s583
        %s585 = sand.u32 %s185, 1
        %s586 = smul.addr %s585, 8
        %s587 = scalar_lea.vmem [#allocation11], %s586
        %s588 = sand.u32 %s211, 1
        %s589 = scalar_lea.sflag [#allocation13], %s588
        %s590 = sand.u32 %s211, 1
        %s591 = smul.addr %s590, 8
        %s592 = scalar_lea.vmem [#allocation12], %s591
        // Predicated region
        $region69: #{tpu_custom_call.1} parent=43 // pred_check
          %p593 = pneg %p195
        $region70: #{tpu_custom_call.1} parent=43 // pred_check_branch
          %595 = sbr.rel (%p593) target = $region72
        $region71: #{tpu_custom_call.1} parent=43 // pred_region
          %s597 = ssub.s32 128, 128
          %598 = vsyncadd %s584, %s597
          %s599 = smul.addr %s34, 8
          %s600 = sadd.s32 %s35, %s599
          %s601 = smul.addr %s600, 128
          %s602 = scalar_lea.hbm %s6, %s601
          %s604 = sshll.u32 %s587, 4
          %s605 = int_to_ptr.vmem [resolvable:$true] %s604
          %607 = dma.vmem_to_hbm [thread:$0]  %s605, 128, %s602, %s584
        $region72: #{tpu_custom_call.1} parent=43 // pred_fallthru
          _
        // Predicated region
        $region73: #{tpu_custom_call.1} parent=43 // pred_check
          %p608 = pneg %p221
        $region74: #{tpu_custom_call.1} parent=43 // pred_check_branch
          %610 = sbr.rel (%p608) target = $region76
        $region75: #{tpu_custom_call.1} parent=43 // pred_region
          %s612 = ssub.s32 128, 128
          %613 = vsyncadd %s589, %s612
          %s614 = smul.addr %s34, 128
          %s615 = scalar_lea.hbm %s7, %s614
          %s617 = sshll.u32 %s592, 4
          %s618 = int_to_ptr.vmem [resolvable:$true] %s617
          %620 = dma.vmem_to_hbm [thread:$0]  %s618, 128, %s615, %s589
        $region76: #{tpu_custom_call.1} parent=43 // pred_fallthru
          _
      $region44: #{tpu_custom_call.1} parent=5 // pred_fallthru
        _
      %p621 = scmp.le.s32.totalorder 2, %s25
      // Predicated region
      $region77: #{tpu_custom_call.1} parent=5 // pred_check
        %p622 = pneg %p621
      $region78: #{tpu_custom_call.1} parent=5 // pred_check_branch
        %624 = sbr.rel (%p622) target = $region80
      $region79: #{tpu_custom_call.1} parent=5 // pred_region
        %s625 = ssub.s32 %s25, 2
        // Predicated region
        $region81: #{tpu_custom_call.1} parent=79 // pred_check
          %p626 = pneg %p201
        $region82: #{tpu_custom_call.1} parent=79 // pred_check_branch
          %628 = sbr.rel (%p626) target = $region84
        $region83: #{tpu_custom_call.1} parent=79 // pred_region
          %s629 = sand.u32 %s186, 1
          %s630 = scalar_lea.sflag [#allocation5], %s629
          %s631 = sand.u32 %s186, 1
          %s632 = smul.addr %s631, 8
          %s633 = scalar_lea.vmem [#allocation11], %s632
          %634 = dma.done %s630, 128
        $region84: #{tpu_custom_call.1} parent=79 // pred_fallthru
          _
        // Predicated region
        $region85: #{tpu_custom_call.1} parent=79 // pred_check
          %p635 = pneg %p227
        $region86: #{tpu_custom_call.1} parent=79 // pred_check_branch
          %637 = sbr.rel (%p635) target = $region88
        $region87: #{tpu_custom_call.1} parent=79 // pred_region
          %s638 = sand.u32 %s212, 1
          %s639 = scalar_lea.sflag [#allocation13], %s638
          %s640 = sand.u32 %s212, 1
          %s641 = smul.addr %s640, 8
          %s642 = scalar_lea.vmem [#allocation12], %s641
          %643 = dma.done %s639, 128
        $region88: #{tpu_custom_call.1} parent=79 // pred_fallthru
          _
      $region80: #{tpu_custom_call.1} parent=5 // pred_fallthru
        _
    $region6: #{tpu_custom_call.1} parent=1 // loop_footer
      %s29 = sadd.s32 1, %s25
    $region7: #{tpu_custom_call.1} parent=1 // loop_footer_branch
      %24 = sbr.rel target = $region3
    $region8: #{tpu_custom_call.1} parent=1 // loop_exit
      _
    %644 = vsyncpa [#allocation4], 1
    %s645 = scalar_lea.sflag [#allocation4], 1
    %646 = vsyncpa %s645, 1
    %647 = vsyncpa [#allocation7], 1
    %648 = vsyncpa [#allocation10], 1
    %649 = vsyncpa [#allocation5], 1
    %s650 = scalar_lea.sflag [#allocation5], 1
    %651 = vsyncpa %s650, 1
    %652 = vsyncpa [#allocation13], 1
    %s653 = scalar_lea.sflag [#allocation13], 1
    %654 = vsyncpa %s653, 1

</llo_original>
